<compile_context>
chip_gen: v7x
topology: tpu7x:2x2x1
jax: 0.10.0
libtpu: 0.0.40
codegen_flags: <defaults>
</compile_context>

<pallas_src>
import functools

import jax
import jax.numpy as jnp
from jax import lax
from jax.experimental import pallas as pl
from jax.experimental.pallas import tpu as pltpu


_NUM_SPLITK_CORES = 2  # v7x has 2 TCs; the extra serial pass is harmless on v5e/v6e.


def _vmem_capacity_bytes():
    try:
        return int(pltpu.get_tpu_info().vmem_capacity_bytes)
    except Exception:
        return 64 << 20  # conservative default (v7x per-TC VMEM)


def _feature_tile(M, K, vmem_cap):
    """K-tile width for the (M, tk) f32 feature block (lane-aligned)."""
    # Per-buffer budget scales with on-chip VMEM: ~8 MiB on v7x (64 MiB VMEM),
    # ~16 MiB on v5e/v6e (128 MiB) - bigger tiles amortize the ~0.35 us
    # per-grid-step overhead on the HBM-bound stream.
    tile_bytes = max(4 << 20, min(16 << 20, vmem_cap // 8))
    tk = (tile_bytes // (max(M, 1) * 4)) // 128 * 128
    tk = max(tk, 128)
    if tk >= K:
        tk = K  # single K block: block_shape == full dim, no alignment constraint
    return tk


def _vmem_limit(M, tk, vmem_cap):
    feat_bytes = 2 * M * tk * 4   # double-buffered f32 feature tile
    gram_bytes = 2 * M * M * 4    # resident per-core Gram block + write-back
    needed = feat_bytes + gram_bytes + (8 << 20)
    return int(min(max(needed, 32 << 20), vmem_cap * 3 // 4))


def _gram_partial_kernel(K, tk, ksteps, inv_norm, needs_mask, feat_ref, g_ref):
    """Per-core partial Gram, accumulated directly into the resident output block."""
    c = pl.program_id(0)          # split-K core index ("parallel")
    k = pl.program_id(1)          # K-tile index within this core ("arbitrary")

    @pl.when(k == 0)
    def _init():
        g_ref[...] = jnp.zeros_like(g_ref)

    f = feat_ref[...]             # (M, tk) float32 streamed straight from HBM
    if needs_mask:
        # Zero lanes past the logical K extent (ragged tail, or a fully-OOB
        # split-K block that the clamped index_map re-reads).  Must happen
        # before the dot: Pallas does not zero OOB data in partial edge blocks.
        k_start = (c * ksteps + k) * tk
        lane = lax.broadcasted_iota(jnp.int32, f.shape, dimension=1)
        f = jnp.where(lane + k_start < K, f, 0.0)

    fb = f.astype(jnp.bfloat16)   # in-kernel cast; hides under the DMA
    # Contract dim 1 of fb with itself -> (M, M); no explicit fb.T relayout.
    g_ref[...] += lax.dot_general(
        fb, fb, dimension_numbers=(((1,), (1,)), ((), ())),
        preferred_element_type=jnp.float32)

    @pl.when(k == ksteps - 1)
    def _finalize():
        g_ref[...] *= inv_norm


def gram_matrix_pallas(x):
    """x: (a, b, c, d) NCHW -> Gram matrix (a*b, a*b) = (f @ f.T) / (a*b*c*d)."""
    a, b, c, d = x.shape
    M, K = a * b, c * d
    f = x.reshape(M, K)           # free bitcast; streamed as f32

    vmem_cap = _vmem_capacity_bytes()
    tk = _feature_tile(M, K, vmem_cap)
    nk = pl.cdiv(K, tk)
    ncores = _NUM_SPLITK_CORES
    ksteps = pl.cdiv(nk, ncores)
    needs_mask = (ncores * ksteps * tk != K)
    inv_norm = 1.0 / (a * b * c * d)
    last_blk = nk - 1

    kernel = functools.partial(
        _gram_partial_kernel, K, tk, ksteps, inv_norm, needs_mask)

    partials = pl.pallas_call(
        kernel,
        out_shape=jax.ShapeDtypeStruct((ncores, M, M), jnp.float32),
        grid=(ncores, ksteps),
        in_specs=[pl.BlockSpec(
            (M, tk),
            # Clamp so an OOB split-K block never issues an OOB DMA; the
            # in-kernel mask zeroes its (re-read) data so it contributes 0.
            lambda c_, k_: (0, jnp.minimum(c_ * ksteps + k_, last_blk)))],
        out_specs=pl.BlockSpec((None, M, M), lambda c_, k_: (c_, 0, 0)),
        compiler_params=pltpu.CompilerParams(
            dimension_semantics=("parallel", "arbitrary"),
            vmem_limit_bytes=_vmem_limit(M, tk, vmem_cap)),
        cost_estimate=pl.CostEstimate(
            flops=2 * M * M * K,
            transcendentals=0,
            bytes_accessed=M * K * 4 + ncores * M * M * 4),
    )(f)
    return partials.sum(axis=0)   # per-core partial Grams -> full Gram (M, M)


class StyleLossPallas:
    """Mirrors nn.Module StyleLoss: stores the target Gram; forward returns the
    input unchanged and stashes the scalar MSE in self.loss."""

    def __init__(self, target_feature):
        a, b, _, _ = target_feature.shape
        self._M = a * b
        self.target = gram_matrix_pallas(target_feature)
        self.loss = None

    def forward(self, x):
        a, b, _, _ = x.shape
        if a * b != self._M:
            raise ValueError(
                f"input a*b ({a * b}) must match target a*b ({self._M})")
        G = gram_matrix_pallas(x)
        self.G = G
        # MSE against the stored target Gram: a trivial (M, M) jnp op in the
        # wrapper (keeps the kernel free of the double-buffered target input).
        self.loss = jnp.mean((G - self.target) ** 2)
        return x  # StyleLoss passes the input through unchanged


def _gram_ref(x):
    # Reference matches the kernel's bf16 feature cast (f32 accumulation).
    a, b, c, d = x.shape
    f = x.reshape(a * b, c * d).astype(jnp.bfloat16).astype(jnp.float32)
    return (f @ f.T) / (a * b * c * d)


if __name__ == "__main__":
    key = jax.random.PRNGKey(0)
    k_t, k_x = jax.random.split(key)

    # Small shapes consistent with a conv feature map (NCHW).
    a, b, c, d = 2, 4, 16, 16
    target_feature = jax.random.normal(k_t, (a, b, c, d), dtype=jnp.float32)
    x = jax.random.normal(k_x, (a, b, c, d), dtype=jnp.float32)

    module = StyleLossPallas(target_feature)
    out = module.forward(x)
    out = jax.block_until_ready(out)
    loss = jax.block_until_ready(module.loss)

    # Reference check (pure JAX) against PyTorch semantics (bf16 features).
    g_ref = _gram_ref(x)
    t_ref = _gram_ref(target_feature)
    loss_ref = jnp.mean((g_ref - t_ref) ** 2)

    assert out.shape == x.shape and jnp.allclose(out, x), "forward must return input"
    assert jnp.allclose(module.target, t_ref, atol=1e-4, rtol=1e-3), "target Gram mismatch"
    assert jnp.allclose(module.G, g_ref, atol=1e-4, rtol=1e-3), "Gram mismatch"
    assert jnp.allclose(loss, loss_ref, rtol=1e-2, atol=1e-8), "loss mismatch"

    print("KERNEL_OK")
</pallas_src>

<mosaic_0001>
module attributes {stable_mosaic.version = 11 : i64} {
  func.func @_gram_partial_kernel(%arg0: i32, %arg1: i32, %arg2: memref<8x256xf32, #tpu.memory_space<vmem>>, %arg3: memref<1x8x8xf32, #tpu.memory_space<vmem>>) attributes {dimension_semantics = [#tpu.dimension_semantics<parallel>, #tpu.dimension_semantics<arbitrary>], iteration_bounds = array<i64: 2, 1>, scalar_prefetch = 0 : i64, scratch_operands = 0 : i64, tpu.core_type = #tpu.core_type<tc>, window_params = [{transform_indices = @transform_0, window_bounds = array<i64: 8, 256>}, {transform_indices = @transform_1, window_bounds = array<i64: 1, 8, 8>}]} {
    %c0_i32 = arith.constant 0 : i32
    %0 = arith.cmpi eq, %arg1, %c0_i32 : i32
    %1 = arith.extui %0 : i1 to i32
    %c0_i32_0 = arith.constant 0 : i32
    %2 = arith.cmpi ne, %1, %c0_i32_0 : i32
    scf.if %2 {
      %cst_12 = arith.constant 0.000000e+00 : f32
      %25 = vector.broadcast %cst_12 : f32 to vector<8x8xf32>
      %c0_13 = arith.constant 0 : index
      %c0_14 = arith.constant 0 : index
      %c0_15 = arith.constant 0 : index
      %26 = vector.load %arg3[%c0_13, %c0_14, %c0_15] : memref<1x8x8xf32, #tpu.memory_space<vmem>>, vector<1x8x8xf32>
      %27 = vector.shape_cast %26 : vector<1x8x8xf32> to vector<8x8xf32>
      %28 = vector.shape_cast %25 : vector<8x8xf32> to vector<1x8x8xf32>
      tpu.vector_store %arg3[%c0_13, %c0_14, %c0_15], %28 {strides = array<i32>} : memref<1x8x8xf32, #tpu.memory_space<vmem>>, vector<1x8x8xf32>,
    } else {
    }
    %c0 = arith.constant 0 : index
    %c0_1 = arith.constant 0 : index
    %3 = vector.load %arg2[%c0, %c0_1] : memref<8x256xf32, #tpu.memory_space<vmem>>, vector<8x256xf32>
    %c1_i32 = arith.constant 1 : i32
    %4 = arith.muli %arg0, %c1_i32 : i32
    %5 = arith.addi %4, %arg1 : i32
    %c256_i32 = arith.constant 256 : i32
    %6 = arith.muli %5, %c256_i32 : i32
    %7 = tpu.iota {dimensions = array<i32: 1>} : vector<8x256xi32>
    %8 = vector.broadcast %6 : i32 to vector<8x256xi32>
    %9 = arith.addi %7, %8 : vector<8x256xi32>
    %c256_i32_2 = arith.constant 256 : i32
    %10 = vector.broadcast %c256_i32_2 : i32 to vector<8x256xi32>
    %11 = arith.cmpi slt, %9, %10 : vector<8x256xi32>
    %cst = arith.constant 0.000000e+00 : f32
    %12 = vector.broadcast %cst : f32 to vector<8x256xf32>
    %13 = arith.select %11, %3, %12 : vector<8x256xi1>, vector<8x256xf32>
    %14 = arith.truncf %13 : vector<8x256xf32> to vector<8x256xbf16>
    %c0_3 = arith.constant 0 : index
    %c0_4 = arith.constant 0 : index
    %c0_5 = arith.constant 0 : index
    %15 = vector.load %arg3[%c0_3, %c0_4, %c0_5] : memref<1x8x8xf32, #tpu.memory_space<vmem>>, vector<1x8x8xf32>
    %16 = vector.shape_cast %15 : vector<1x8x8xf32> to vector<8x8xf32>
    %cst_6 = arith.constant dense<0.000000e+00> : vector<8x8xf32>
    %17 = tpu.matmul %14, %14, %cst_6 {dimension_numbers = #tpu.dot_dimension_numbers<[1], [1], [0], [0], [0, 0, 1, 0], [], []>} : vector<8x256xbf16>, vector<8x256xbf16>, vector<8x8xf32> -> vector<8x8xf32>
    %18 = arith.addf %16, %17 : vector<8x8xf32>
    %c0_7 = arith.constant 0 : index
    %c0_8 = arith.constant 0 : index
    %c0_9 = arith.constant 0 : index
    %19 = vector.load %arg3[%c0_7, %c0_8, %c0_9] : memref<1x8x8xf32, #tpu.memory_space<vmem>>, vector<1x8x8xf32>
    %20 = vector.shape_cast %19 : vector<1x8x8xf32> to vector<8x8xf32>
    %21 = vector.shape_cast %18 : vector<8x8xf32> to vector<1x8x8xf32>
    tpu.vector_store %arg3[%c0_7, %c0_8, %c0_9], %21 {strides = array<i32>} : memref<1x8x8xf32, #tpu.memory_space<vmem>>, vector<1x8x8xf32>,
    %c0_i32_10 = arith.constant 0 : i32
    %22 = arith.cmpi eq, %arg1, %c0_i32_10 : i32
    %23 = arith.extui %22 : i1 to i32
    %c0_i32_11 = arith.constant 0 : i32
    %24 = arith.cmpi ne, %23, %c0_i32_11 : i32
    scf.if %24 {
      %c0_12 = arith.constant 0 : index
      %c0_13 = arith.constant 0 : index
      %c0_14 = arith.constant 0 : index
      %25 = vector.load %arg3[%c0_12, %c0_13, %c0_14] : memref<1x8x8xf32, #tpu.memory_space<vmem>>, vector<1x8x8xf32>
      %26 = vector.shape_cast %25 : vector<1x8x8xf32> to vector<8x8xf32>
      %cst_15 = arith.constant 4.8828125E-4 : f32
      %27 = vector.broadcast %cst_15 : f32 to vector<8x8xf32>
      %28 = arith.mulf %26, %27 : vector<8x8xf32>
      %c0_16 = arith.constant 0 : index
      %c0_17 = arith.constant 0 : index
      %c0_18 = arith.constant 0 : index
      %29 = vector.load %arg3[%c0_16, %c0_17, %c0_18] : memref<1x8x8xf32, #tpu.memory_space<vmem>>, vector<1x8x8xf32>
      %30 = vector.shape_cast %29 : vector<1x8x8xf32> to vector<8x8xf32>
      %31 = vector.shape_cast %28 : vector<8x8xf32> to vector<1x8x8xf32>
      tpu.vector_store %arg3[%c0_16, %c0_17, %c0_18], %31 {strides = array<i32>} : memref<1x8x8xf32, #tpu.memory_space<vmem>>, vector<1x8x8xf32>,
    } else {
    }
    return
  }
  func.func @transform_0(%arg0: i32, %arg1: i32) -> (i32, i32) {
    %c1_i32 = arith.constant 1 : i32
    %0 = arith.muli %arg0, %c1_i32 : i32
    %1 = arith.addi %0, %arg1 : i32
    %c0_i32 = arith.constant 0 : i32
    %2 = arith.minsi %1, %c0_i32 : i32
    %c0_i32_0 = arith.constant 0 : i32
    %c0_i32_1 = arith.constant 0 : i32
    return %c0_i32_0, %2 : i32, i32
  }
  func.func @transform_1(%arg0: i32, %arg1: i32) -> (i32, i32, i32) {
    %c0_i32 = arith.constant 0 : i32
    %c0_i32_0 = arith.constant 0 : i32
    %c0_i32_1 = arith.constant 0 : i32
    return %arg0, %c0_i32, %c0_i32_0 : i32, i32, i32
  }
}

</mosaic_0001>

<llo_original>
// kernel: tpu_custom_call.1
$region0: #{tpu_custom_call.1}
  #allocation0 [shape = 'u32[]', space=smem, size = 0x4, offset = 0x4, fixed_abs, tag = 'smem constant byte address 0x4 - core index']
  #allocation1 [shape = 'u32[144,128]{1,0:T(1,128)}', space=vmem, size = 0x12000, scoped, tag = 'internal scratch']
  %s0 = inlined_call_operand.hbm [shape: f32[8,256], index: 0, kind: input, shape index: {}]
  %s1 = inlined_call_operand.hbm [shape: f32[2,8,8], index: 1, kind: output, shape index: {}]
  %s2 = sld [smem:[#allocation0]]
  $region49: #{tpu_custom_call.1} parent=0
    _
  %s4 = ssub.s32 1, %s2
  %s5 = scalar_select 0, %s4, %s2
  $region1: #{tpu_custom_call.1} parent=0
    #allocation2 [shape = 'u8[16384]{0}', space=vmem, size = 0x4000, scoped, tag = 'input window, operand 0']
    #allocation3 [shape = 's32[2]{0}', space=sflag, size = 0x8, scoped, tag = 'scoped memory for tpu_custom_call.1']
    #allocation4 [shape = 's32[2]{0}', space=sflag, size = 0x8, scoped, tag = 'scoped memory for tpu_custom_call.1']
    #allocation5 [shape = 'u8[8192]{0}', space=vmem, size = 0x2000, scoped, tag = 'output window, operand 0']
    %6 = vsyncpa [#allocation3], 0
    %s7 = scalar_lea.sflag [#allocation3], 1
    %8 = vsyncpa %s7, 0
    %9 = vsyncpa [#allocation4], 0
    %s10 = scalar_lea.sflag [#allocation4], 1
    %11 = vsyncpa %s10, 0
    loop: start=0, step=1, limit=4
    $region2: #{tpu_custom_call.1} parent=1 // loop_pre_header
      _
    $region3: #{tpu_custom_call.1} parent=1 // loop_header
      %s13 = sphi 0, %s17
      %p14 = scmp.ge.s32.totalorder %s13, 4
      %s20 = sphi 0, %s32
      %s21 = sphi 0, %s28
      %s22 = sphi 0, %s20
      %s23 = sphi 0, %s21
      %s24 = sphi 0, %s22
      %s25 = sphi 0, %s23
      %s41 = sphi 0, %s43
      %s44 = sphi 0, %s41
      %s45 = sphi 0, %s44
      %s61 = sphi 0, %s45
      %s67 = sphi 0, %s69
      %s70 = sphi 0, %s67
      %s71 = sphi 0, %s70
      %s87 = sphi 0, %s71
    $region4: #{tpu_custom_call.1} parent=1 // loop_header_branch
      %16 = sbr.rel (%p14) target = $region8
    $region5: #{tpu_custom_call.1} parent=1 // loop_body
      %s18 = ssub.s32 %s13, 1
      %s19 = ssub.s32 %s13, 2
      %s26 = sadd.s32 1, %s21
      %p27 = scmp.ge.s32.totalorder %s26, 1
      %s28 = scalar_select %p27, 0, %s26
      %s29 = sadd.s32 1, %s20
      %s30 = scalar_select %p27, %s29, %s20
      %p31 = scmp.ge.s32.totalorder %s30, 2
      %s32 = scalar_select %p31, 0, %s30
      %s33 = sadd.s32 %s20, %s21
      %p34 = scmp.lt.s32.totalorder %s33, 0
      %s35 = scalar_select %p34, %s33, 0
      %s36 = sadd.s32 %s32, %s28
      %p37 = scmp.lt.s32.totalorder %s36, 0
      %s38 = scalar_select %p37, %s36, 0
      %s39 = ssub.s32 %s35, %s38
      %p40 = scmp.eq.s32.totalorder %s39, 0
      %s42 = sadd.s32 %s41, 1
      %s43 = scalar_select %p40, %s41, %s42
      %p46 = pneg %p40
      %p47 = scmp.eq.s32.totalorder %s13, 1
      %p48 = por %p46, %p47
      %p49 = scmp.ne.s32.totalorder %s41, %s44
      %p50 = scmp.eq.s32.totalorder %s13, 0
      %p51 = por %p49, %p50
      %p52 = scmp.ne.s32.totalorder %s41, %s44
      %p53 = scmp.eq.s32.totalorder %s18, 1
      %p54 = por %p52, %p53
      %p55 = scmp.ne.s32.totalorder %s44, %s45
      %p56 = scmp.eq.s32.totalorder %s18, 0
      %p57 = por %p55, %p56
      %p58 = scmp.ne.s32.totalorder %s44, %s45
      %p59 = scmp.eq.s32.totalorder %s19, 1
      %p60 = por %p58, %p59
      %p62 = scmp.ne.s32.totalorder %s45, %s61
      %p63 = scmp.eq.s32.totalorder %s19, 0
      %p64 = por %p62, %p63
      %s65 = ssub.s32 %s20, %s32
      %p66 = scmp.eq.s32.totalorder %s65, 0
      %s68 = sadd.s32 %s67, 1
      %s69 = scalar_select %p66, %s67, %s68
      %p72 = pneg %p66
      %p73 = scmp.eq.s32.totalorder %s13, 1
      %p74 = por %p72, %p73
      %p75 = scmp.ne.s32.totalorder %s67, %s70
      %p76 = scmp.eq.s32.totalorder %s13, 0
      %p77 = por %p75, %p76
      %p78 = scmp.ne.s32.totalorder %s67, %s70
      %p79 = scmp.eq.s32.totalorder %s18, 1
      %p80 = por %p78, %p79
      %p81 = scmp.ne.s32.totalorder %s70, %s71
      %p82 = scmp.eq.s32.totalorder %s18, 0
      %p83 = por %p81, %p82
      %p84 = scmp.ne.s32.totalorder %s70, %s71
      %p85 = scmp.eq.s32.totalorder %s19, 1
      %p86 = por %p84, %p85
      %p88 = scmp.ne.s32.totalorder %s71, %s87
      %p89 = scmp.eq.s32.totalorder %s19, 0
      %p90 = por %p88, %p89
      %p91 = scmp.le.s32.totalorder 1, %s13
      %p92 = scmp.lt.s32.totalorder %s13, 3
      %p93 = pnand %p91, %p92
      %p94 = pneg %p93
      // Predicated region
      $region9: #{tpu_custom_call.1} parent=5 // pred_check
        _
      $region10: #{tpu_custom_call.1} parent=5 // pred_check_branch
        %96 = sbr.rel (%p93) target = $region12
      $region11: #{tpu_custom_call.1} parent=5 // pred_region
        %s97 = ssub.s32 %s13, 1
      $region12: #{tpu_custom_call.1} parent=5 // pred_fallthru
        _
      %p98 = scmp.lt.s32.totalorder %s13, 2
      // Predicated region
      $region13: #{tpu_custom_call.1} parent=5 // pred_check
        %p99 = pneg %p98
      $region14: #{tpu_custom_call.1} parent=5 // pred_check_branch
        %101 = sbr.rel (%p99) target = $region16
      $region15: #{tpu_custom_call.1} parent=5 // pred_region
        // Predicated region
        $region17: #{tpu_custom_call.1} parent=15 // pred_check
          %p102 = pneg %p51
        $region18: #{tpu_custom_call.1} parent=15 // pred_check_branch
          %104 = sbr.rel (%p102) target = $region20
        $region19: #{tpu_custom_call.1} parent=15 // pred_region
          %s105 = sand.u32 %s41, 1
          %s106 = scalar_lea.sflag [#allocation3], %s105
          %s107 = sand.u32 %s41, 1
          %s108 = smul.addr %s107, 16
          %s109 = scalar_lea.vmem [#allocation2], %s108
          %s110 = sadd.s32 %s20, %s21
          %p111 = scmp.lt.s32.totalorder %s110, 0
          %s112 = scalar_select %p111, %s110, 0
          %s113 = smul.u32 2, %s112
          %s115 = ssub.s32 256, 256
          %116 = vsyncadd %s106, %s115
          %s117 = smul.addr %s113, 128
          %s118 = scalar_lea.hbm %s0, %s117
          %s120 = sshll.u32 %s109, 4
          %s121 = int_to_ptr.vmem [resolvable:$true] %s120
          %123 = dma.hbm_to_vmem [thread:$0]  %s118, 256, %s121, %s106
        $region20: #{tpu_custom_call.1} parent=15 // pred_fallthru
          _
      $region16: #{tpu_custom_call.1} parent=5 // pred_fallthru
        _
      %p124 = scmp.le.s32.totalorder 1, %s13
      %p125 = scmp.lt.s32.totalorder %s13, 3
      %p126 = pnand %p124, %p125
      %p127 = pneg %p126
      // Predicated region
      $region21: #{tpu_custom_call.1} parent=5 // pred_check
        _
      $region22: #{tpu_custom_call.1} parent=5 // pred_check_branch
        %129 = sbr.rel (%p126) target = $region24
      $region23: #{tpu_custom_call.1} parent=5 // pred_region
        %s130 = ssub.s32 %s13, 1
        %s131 = sand.u32 %s44, 1
        %s132 = scalar_lea.sflag [#allocation3], %s131
        %s133 = sand.u32 %s44, 1
        %s134 = smul.addr %s133, 16
        %s135 = scalar_lea.vmem [#allocation2], %s134
        // Predicated region
        $region25: #{tpu_custom_call.1} parent=23 // pred_check
          %p136 = pneg %p57
        $region26: #{tpu_custom_call.1} parent=23 // pred_check_branch
          %138 = sbr.rel (%p136) target = $region28
        $region27: #{tpu_custom_call.1} parent=23 // pred_region
          %139 = dma.done %s132, 256
        $region28: #{tpu_custom_call.1} parent=23 // pred_fallthru
          _
        %s140 = sand.u32 %s44, 1
        %s141 = scalar_lea.sflag [#allocation3], %s140
        %s142 = sand.u32 %s44, 1
        %s143 = smul.addr %s142, 16
        %s144 = scalar_lea.vmem [#allocation2], %s143
        %p145 = pneg %p57
        %p146 = pneg %p54
        %p147 = pneg %p83
        %p148 = pneg %p80
        %s149 = sand.u32 %s70, 1
        %s150 = scalar_lea.sflag [#allocation4], %s149
        %s151 = sand.u32 %s70, 1
        %s152 = smul.addr %s151, 8
        %s153 = scalar_lea.vmem [#allocation5], %s152
        %s154 = sadd.s32 %s22, %s23
        %p155 = scmp.lt.s32.totalorder %s154, 0
        %s156 = scalar_select %p155, %s154, 0
        %s157 = smul.u32 2, %s156
        %p159 = scmp.eq.s32.totalorder %s23, 0
        // Predicated region
        $region29: #{tpu_custom_call.1} parent=23 // pred_check
          %p160 = pneg %p159
        $region30: #{tpu_custom_call.1} parent=23 // pred_check_branch
          %162 = sbr.rel (%p160) target = $region32
        $region31: #{tpu_custom_call.1} parent=23 // pred_region
          %vm163 = vcmask 64512
          %164 = vst.msk [vmem:[%s153] sm:$0xff] %vm163, 0.0
        $region32: #{tpu_custom_call.1} parent=23 // pred_fallthru
          _
        %v165 = vld [vmem:[%s135] sm:$0xff]
        %v166 = vld [vmem:[%s135 + $0x8] sm:$0xff]
        %s167 = sadd.s32 %s22, %s23
        %s168 = smul.u32 %s167, 256
        %v169 = vlaneseq
        %v170 = vand.u32 %v169, 127
        %v171 = vadd.s32 %v170, 128
        %v172 = vstv %s168
        %v173 = vadd.s32 %v170, %v172
        %v174 = vadd.s32 %v171, %v172
        %vm175 = vcmp.lt.s32.totalorder %v173, 256
        %vm176 = vcmp.lt.s32.totalorder %v174, 256
        %v177 = vsel %vm175, %v165, 0.0
        %v178 = vsel %vm176, %v166, 0.0
        %v179 = vpack.c.bf16 %v177, %v177
        %v180 = vpack.c.bf16 %v178, %v178
        %v181 = vld [vmem:[%s153] sm:$0xff]
        %182 = vmatprep.subr.bf16.mxu0 %v180
        %183 = vmatpush1.bf16.xpose.msra.mxu0 %v179
        %184 = vmatprep.subr.bf16.mxu0 0
        %185 = vmatpush1.bf16.xpose.msra.mxu0 0
        %186 = vmatprep.subr.bf16.mxu0 0
        %187 = vmatpush1.bf16.xpose.msra.mxu0 0
        %188 = vmatprep.subr.bf16.mxu0 0
        %189 = vmatpush1.bf16.xpose.msra.mxu0 0
        %190 = vmatprep.subr.bf16.mxu0 0
        %191 = vmatpush1.bf16.xpose.msra.mxu0 0
        %192 = vmatprep.subr.bf16.mxu0 0
        %193 = vmatpush1.bf16.xpose.msra.mxu0 0
        %194 = vmatprep.subr.bf16.mxu0 0
        %195 = vmatpush1.bf16.xpose.msra.mxu0 0
        %196 = vmatprep.subr.bf16.mxu0 0
        %197 = vmatpush1.bf16.xpose.msra.mxu0 0
        %198 = vmatprep.subr.bf16.mxu0 0
        %199 = vmatpush1.bf16.xpose.msra.mxu0 0
        %200 = vmatprep.subr.bf16.mxu0 0
        %201 = vmatpush1.bf16.xpose.msra.mxu0 0
        %202 = vmatprep.subr.bf16.mxu0 0
        %203 = vmatpush1.bf16.xpose.msra.mxu0 0
        %204 = vmatprep.subr.bf16.mxu0 0
        %205 = vmatpush1.bf16.xpose.msra.mxu0 0
        %206 = vmatprep.subr.bf16.mxu0 0
        %207 = vmatpush1.bf16.xpose.msra.mxu0 0
        %208 = vmatprep.subr.bf16.mxu0 0
        %209 = vmatpush1.bf16.xpose.msra.mxu0 0
        %210 = vmatprep.subr.bf16.mxu0 0
        %211 = vmatpush1.bf16.xpose.msra.mxu0 0
        %212 = vmatprep.subr.bf16.mxu0 0
        %213 = vmatpush1.bf16.xpose.msra.mxu0 0
        %214 = vmatprep.mubr.bf16.mxu0 %v180
        %215 = vmatmul.mubr.bf16.gmra.mrb[0].mxu0 %v179
        %v216 = vpop.f32.mrb[0].mxu0
        %v217 = vadd.f32 0.0, %v216
        %v218 = vpop.f32.mrb[0].mxu0
        %v219 = vpop.f32.mrb[0].mxu0
        %v220 = vpop.f32.mrb[0].mxu0
        %221 = vdwg.mxu0
        %v222 = vadd.f32 %v181, %v217
        %vm223 = vcmask 64512
        %224 = vst.msk [vmem:[%s153] sm:$0xff] %vm223, %v222
        // Predicated region
        $region33: #{tpu_custom_call.1} parent=23 // pred_check
          %p225 = pneg %p159
        $region34: #{tpu_custom_call.1} parent=23 // pred_check_branch
          %227 = sbr.rel (%p225) target = $region36
        $region35: #{tpu_custom_call.1} parent=23 // pred_region
          %v228 = vld [vmem:[%s153] sm:$0xff]
          %v229 = vmul.f32 %v228, 0.00048828125
          %230 = vst.msk [vmem:[%s153] sm:$0xff] %vm223, %v229
        $region36: #{tpu_custom_call.1} parent=23 // pred_fallthru
          _
        %s231 = sand.u32 %s70, 1
        %s232 = scalar_lea.sflag [#allocation4], %s231
        %s233 = sand.u32 %s70, 1
        %s234 = smul.addr %s233, 8
        %s235 = scalar_lea.vmem [#allocation5], %s234
        // Predicated region
        $region37: #{tpu_custom_call.1} parent=23 // pred_check
          %p236 = pneg %p80
        $region38: #{tpu_custom_call.1} parent=23 // pred_check_branch
          %238 = sbr.rel (%p236) target = $region40
        $region39: #{tpu_custom_call.1} parent=23 // pred_region
          %s240 = ssub.s32 128, 128
          %241 = vsyncadd %s232, %s240
          %s242 = smul.addr %s22, 128
          %s243 = scalar_lea.hbm %s1, %s242
          %s245 = sshll.u32 %s235, 4
          %s246 = int_to_ptr.vmem [resolvable:$true] %s245
          %248 = dma.vmem_to_hbm [thread:$0]  %s246, 128, %s243, %s232
        $region40: #{tpu_custom_call.1} parent=23 // pred_fallthru
          _
      $region24: #{tpu_custom_call.1} parent=5 // pred_fallthru
        _
      %p249 = scmp.le.s32.totalorder 2, %s13
      // Predicated region
      $region41: #{tpu_custom_call.1} parent=5 // pred_check
        %p250 = pneg %p249
      $region42: #{tpu_custom_call.1} parent=5 // pred_check_branch
        %252 = sbr.rel (%p250) target = $region44
      $region43: #{tpu_custom_call.1} parent=5 // pred_region
        %s253 = ssub.s32 %s13, 2
        // Predicated region
        $region45: #{tpu_custom_call.1} parent=43 // pred_check
          %p254 = pneg %p86
        $region46: #{tpu_custom_call.1} parent=43 // pred_check_branch
          %256 = sbr.rel (%p254) target = $region48
        $region47: #{tpu_custom_call.1} parent=43 // pred_region
          %s257 = sand.u32 %s71, 1
          %s258 = scalar_lea.sflag [#allocation4], %s257
          %s259 = sand.u32 %s71, 1
          %s260 = smul.addr %s259, 8
          %s261 = scalar_lea.vmem [#allocation5], %s260
          %262 = dma.done %s258, 128
        $region48: #{tpu_custom_call.1} parent=43 // pred_fallthru
          _
      $region44: #{tpu_custom_call.1} parent=5 // pred_fallthru
        _
    $region6: #{tpu_custom_call.1} parent=1 // loop_footer
      %s17 = sadd.s32 1, %s13
    $region7: #{tpu_custom_call.1} parent=1 // loop_footer_branch
      %12 = sbr.rel target = $region3
    $region8: #{tpu_custom_call.1} parent=1 // loop_exit
      _
    %263 = vsyncpa [#allocation3], 1
    %s264 = scalar_lea.sflag [#allocation3], 1
    %265 = vsyncpa %s264, 1
    %266 = vsyncpa [#allocation4], 1
    %s267 = scalar_lea.sflag [#allocation4], 1
    %268 = vsyncpa %s267, 1

</llo_original>
